<compile_context>
chip_gen: v5e
topology: v5e:2x2
jax: 0.10.0
libtpu: 0.0.40
codegen_flags: <defaults>
</compile_context>

<pallas_src>
import jax
import jax.numpy as jnp
from jax.experimental import pallas as pl
from jax.experimental.pallas import tpu as pltpu


def _pixelnorm_kernel(x_ref, o_ref):
    # Block shape: (1, C, T).  Reduction over C happens fully in-block.
    x = x_ref[...]
    c = x_ref.shape[1]
    xf = x.astype(jnp.float32)

    # mean(x^2) over channels as sum * (1/C)  (constant multiply, not divide)
    ms = jnp.sum(xf * xf, axis=1, keepdims=True) * (1.0 / c)   # (1, 1, T)
    inv = jax.lax.rsqrt(ms + 1e-8)                             # reduced row only

    if o_ref.dtype == jnp.float32:
        # exact-parity f32 path
        o_ref[...] = xf * inv
    else:
        # bf16/fp16 path: broadcast multiply in the native dtype (v6e/v7x
        # have bf16 VALU); the reduction above already ran in f32.
        o_ref[...] = (x * inv.astype(x.dtype)).astype(o_ref.dtype)


def pixel_norm(x, *, block_bytes_target=2 * 1024 * 1024):
    """x: (N, C, H, W) -> (N, C, H, W), normalized over the channel dim."""
    N, C, H, W = x.shape
    HW = H * W
    x_flat = x.reshape(N, C, HW)
    itemsize = jnp.dtype(x.dtype).itemsize
    full_block_bytes = C * HW * itemsize

    if full_block_bytes <= block_bytes_target or HW <= 128:
        # Full-slab path: one block covers the whole (C, HW) slice.  Last two
        # block dims equal the full array dims, so no 128-multiple constraint
        # and therefore no padding / cropping passes over HBM.
        grid = (N,)
        in_specs = [pl.BlockSpec((1, C, HW), lambda n: (n, 0, 0))]
        out_spec = pl.BlockSpec((1, C, HW), lambda n: (n, 0, 0))
        dim_sems = ("parallel",)
    else:
        # Tiled path: lane-dense tile (multiple of 128) sized so one block is
        # ~block_bytes_target; in+out double buffers stay small on every
        # generation.  Boundary block (HW % tile != 0) uses masked stores.
        lanes_budget = max(block_bytes_target // (C * itemsize), 128)
        tile = max((lanes_budget // 128) * 128, 128)
        tile = min(tile, ((HW + 127) // 128) * 128)
        grid = (N, pl.cdiv(HW, tile))
        in_specs = [pl.BlockSpec((1, C, tile), lambda n, s: (n, 0, s))]
        out_spec = pl.BlockSpec((1, C, tile), lambda n, s: (n, 0, s))
        dim_sems = ("parallel", "parallel")

    out_flat = pl.pallas_call(
        _pixelnorm_kernel,
        out_shape=jax.ShapeDtypeStruct((N, C, HW), x.dtype),
        grid=grid,
        in_specs=in_specs,
        out_specs=out_spec,
        compiler_params=pltpu.CompilerParams(dimension_semantics=dim_sems),
    )(x_flat)

    return out_flat.reshape(N, C, H, W)


if __name__ == "__main__":
    def _ref(x):
        return x / jnp.sqrt(jnp.mean(x.astype(jnp.float32) ** 2, axis=1,
                                     keepdims=True) + 1e-8).astype(x.dtype)

    # Small canonical shape (full-slab path).
    x = jax.random.normal(jax.random.PRNGKey(0), (2, 4, 16, 16), dtype=jnp.float32)
    out = pixel_norm(x)
    jax.block_until_ready(out)
    assert out.shape == x.shape
    assert jnp.allclose(out, _ref(x), atol=1e-5, rtol=1e-5)

    # HW not a multiple of 128 (full-slab path handles it with no padding).
    x2 = jax.random.normal(jax.random.PRNGKey(1), (2, 8, 28, 28), dtype=jnp.float32)
    out2 = pixel_norm(x2)
    jax.block_until_ready(out2)
    assert jnp.allclose(out2, _ref(x2), atol=1e-5, rtol=1e-5)

    # Force the tiled path (small VMEM target) with a non-128-multiple HW so
    # the masked boundary block is exercised too.
    x3 = jax.random.normal(jax.random.PRNGKey(2), (1, 8, 60, 60), dtype=jnp.float32)
    out3 = pixel_norm(x3, block_bytes_target=32 * 1024)
    jax.block_until_ready(out3)
    assert jnp.allclose(out3, _ref(x3), atol=1e-5, rtol=1e-5)

    # bf16 path (reduction in f32, normalize multiply in bf16).
    x4 = jax.random.normal(jax.random.PRNGKey(3), (2, 16, 32, 32),
                           dtype=jnp.bfloat16)
    out4 = pixel_norm(x4)
    jax.block_until_ready(out4)
    assert jnp.allclose(out4.astype(jnp.float32), _ref(x4).astype(jnp.float32),
                        atol=2e-2, rtol=2e-2)

    print("KERNEL_OK")
</pallas_src>

<mosaic_0001>
module attributes {stable_mosaic.version = 11 : i64} {
  func.func @_pixelnorm_kernel(%arg0: i32, %arg1: memref<1x4x256xf32, #tpu.memory_space<vmem>>, %arg2: memref<1x4x256xf32, #tpu.memory_space<vmem>>) attributes {dimension_semantics = [#tpu.dimension_semantics<parallel>], iteration_bounds = array<i64: 2>, scalar_prefetch = 0 : i64, scratch_operands = 0 : i64, tpu.core_type = #tpu.core_type<tc>, window_params = [{transform_indices = @transform_0, window_bounds = array<i64: 1, 4, 256>}, {transform_indices = @transform_1, window_bounds = array<i64: 1, 4, 256>}]} {
    %c0 = arith.constant 0 : index
    %c0_0 = arith.constant 0 : index
    %c0_1 = arith.constant 0 : index
    %0 = vector.load %arg1[%c0, %c0_0, %c0_1] : memref<1x4x256xf32, #tpu.memory_space<vmem>>, vector<1x4x256xf32>
    %1 = arith.mulf %0, %0 : vector<1x4x256xf32>
    %cst = arith.constant dense<0.000000e+00> : vector<1x256xf32>
    %2 = vector.multi_reduction <add>, %1, %cst [1] : vector<1x4x256xf32> to vector<1x256xf32>
    %3 = vector.shape_cast %2 : vector<1x256xf32> to vector<1x1x256xf32>
    %cst_2 = arith.constant 2.500000e-01 : f32
    %4 = vector.broadcast %cst_2 : f32 to vector<1x1x256xf32>
    %5 = arith.mulf %3, %4 : vector<1x1x256xf32>
    %cst_3 = arith.constant 9.99999993E-9 : f32
    %6 = vector.broadcast %cst_3 : f32 to vector<1x1x256xf32>
    %7 = arith.addf %5, %6 : vector<1x1x256xf32>
    %8 = math.rsqrt %7 : vector<1x1x256xf32>
    %9 = vector.broadcast %8 : vector<1x1x256xf32> to vector<1x4x256xf32>
    %10 = arith.mulf %0, %9 : vector<1x4x256xf32>
    %c0_4 = arith.constant 0 : index
    %c0_5 = arith.constant 0 : index
    %c0_6 = arith.constant 0 : index
    %11 = vector.load %arg2[%c0_4, %c0_5, %c0_6] : memref<1x4x256xf32, #tpu.memory_space<vmem>>, vector<1x4x256xf32>
    tpu.vector_store %arg2[%c0_4, %c0_5, %c0_6], %10 {strides = array<i32>} : memref<1x4x256xf32, #tpu.memory_space<vmem>>, vector<1x4x256xf32>,
    return
  }
  func.func @transform_0(%arg0: i32) -> (i32, i32, i32) {
    %c0_i32 = arith.constant 0 : i32
    %c0_i32_0 = arith.constant 0 : i32
    %c0_i32_1 = arith.constant 0 : i32
    return %arg0, %c0_i32, %c0_i32_0 : i32, i32, i32
  }
  func.func @transform_1(%arg0: i32) -> (i32, i32, i32) {
    %c0_i32 = arith.constant 0 : i32
    %c0_i32_0 = arith.constant 0 : i32
    %c0_i32_1 = arith.constant 0 : i32
    return %arg0, %c0_i32, %c0_i32_0 : i32, i32, i32
  }
}

</mosaic_0001>

<llo_original>
// kernel: tpu_custom_call.1
$region0: #{tpu_custom_call.1}
  #allocation0 [shape = 'u32[]', space=smem, size = 0x4, offset = 0x4, fixed_abs, tag = 'smem constant byte address 0x4 - core index']
  #allocation1 [shape = 'u32[72,128]{1,0:T(1,128)}', space=vmem, size = 0x9000, scoped, tag = 'internal scratch']
  %s0 = inlined_call_operand.hbm [shape: f32[2,4,256], index: 0, kind: input, shape index: {}]
  %s1 = inlined_call_operand.hbm [shape: f32[2,4,256], index: 1, kind: output, shape index: {}]
  %s2 = sld [smem:[#allocation0]]
  $region41: #{tpu_custom_call.1} parent=0
    _
  %s4 = ssub.s32 1, %s2
  %s5 = scalar_select 0, %s4, %s2
  $region1: #{tpu_custom_call.1} parent=0
    #allocation2 [shape = 'u8[8192]{0}', space=vmem, size = 0x2000, scoped, tag = 'input window, operand 0']
    #allocation3 [shape = 's32[2]{0}', space=sflag, size = 0x8, scoped, tag = 'scoped memory for tpu_custom_call.1']
    #allocation4 [shape = 's32[2]{0}', space=sflag, size = 0x8, scoped, tag = 'scoped memory for tpu_custom_call.1']
    #allocation5 [shape = 'u8[8192]{0}', space=vmem, size = 0x2000, scoped, tag = 'output window, operand 0']
    %6 = vsyncpa [#allocation3], 0
    %s7 = scalar_lea.sflag [#allocation3], 1
    %8 = vsyncpa %s7, 0
    %9 = vsyncpa [#allocation4], 0
    %s10 = scalar_lea.sflag [#allocation4], 1
    %11 = vsyncpa %s10, 0
    loop: start=0, step=1, limit=4
    $region2: #{tpu_custom_call.1} parent=1 // loop_pre_header
      _
    $region3: #{tpu_custom_call.1} parent=1 // loop_header
      %s13 = sphi 0, %s17
      %p14 = scmp.ge.s32.totalorder %s13, 4
      %s23 = sphi 0, %s25
      %s26 = sphi 0, %s23
      %s27 = sphi 0, %s26
      %s43 = sphi 0, %s27
      %s49 = sphi 0, %s51
      %s52 = sphi 0, %s49
      %s53 = sphi 0, %s52
      %s69 = sphi 0, %s53
    $region4: #{tpu_custom_call.1} parent=1 // loop_header_branch
      %16 = sbr.rel (%p14) target = $region8
    $region5: #{tpu_custom_call.1} parent=1 // loop_body
      %s18 = ssub.s32 %s13, 1
      %s19 = ssub.s32 %s13, 2
      %s20 = sadd.s32 %s13, 1
      %s21 = ssub.s32 %s13, %s20
      %p22 = scmp.eq.s32.totalorder %s21, 0
      %s24 = sadd.s32 %s23, 1
      %s25 = scalar_select %p22, %s23, %s24
      %p28 = pneg %p22
      %p29 = scmp.eq.s32.totalorder %s13, 1
      %p30 = por %p28, %p29
      %p31 = scmp.ne.s32.totalorder %s23, %s26
      %p32 = scmp.eq.s32.totalorder %s13, 0
      %p33 = por %p31, %p32
      %p34 = scmp.ne.s32.totalorder %s23, %s26
      %p35 = scmp.eq.s32.totalorder %s18, 1
      %p36 = por %p34, %p35
      %p37 = scmp.ne.s32.totalorder %s26, %s27
      %p38 = scmp.eq.s32.totalorder %s18, 0
      %p39 = por %p37, %p38
      %p40 = scmp.ne.s32.totalorder %s26, %s27
      %p41 = scmp.eq.s32.totalorder %s19, 1
      %p42 = por %p40, %p41
      %p44 = scmp.ne.s32.totalorder %s27, %s43
      %p45 = scmp.eq.s32.totalorder %s19, 0
      %p46 = por %p44, %p45
      %s47 = ssub.s32 %s13, %s20
      %p48 = scmp.eq.s32.totalorder %s47, 0
      %s50 = sadd.s32 %s49, 1
      %s51 = scalar_select %p48, %s49, %s50
      %p54 = pneg %p48
      %p55 = scmp.eq.s32.totalorder %s13, 1
      %p56 = por %p54, %p55
      %p57 = scmp.ne.s32.totalorder %s49, %s52
      %p58 = scmp.eq.s32.totalorder %s13, 0
      %p59 = por %p57, %p58
      %p60 = scmp.ne.s32.totalorder %s49, %s52
      %p61 = scmp.eq.s32.totalorder %s18, 1
      %p62 = por %p60, %p61
      %p63 = scmp.ne.s32.totalorder %s52, %s53
      %p64 = scmp.eq.s32.totalorder %s18, 0
      %p65 = por %p63, %p64
      %p66 = scmp.ne.s32.totalorder %s52, %s53
      %p67 = scmp.eq.s32.totalorder %s19, 1
      %p68 = por %p66, %p67
      %p70 = scmp.ne.s32.totalorder %s53, %s69
      %p71 = scmp.eq.s32.totalorder %s19, 0
      %p72 = por %p70, %p71
      %p73 = scmp.le.s32.totalorder 1, %s13
      %p74 = scmp.lt.s32.totalorder %s13, 3
      %p75 = pnand %p73, %p74
      %p76 = pneg %p75
      // Predicated region
      $region9: #{tpu_custom_call.1} parent=5 // pred_check
        _
      $region10: #{tpu_custom_call.1} parent=5 // pred_check_branch
        %78 = sbr.rel (%p75) target = $region12
      $region11: #{tpu_custom_call.1} parent=5 // pred_region
        %s79 = ssub.s32 %s13, 1
      $region12: #{tpu_custom_call.1} parent=5 // pred_fallthru
        _
      %p80 = scmp.lt.s32.totalorder %s13, 2
      // Predicated region
      $region13: #{tpu_custom_call.1} parent=5 // pred_check
        %p81 = pneg %p80
      $region14: #{tpu_custom_call.1} parent=5 // pred_check_branch
        %83 = sbr.rel (%p81) target = $region16
      $region15: #{tpu_custom_call.1} parent=5 // pred_region
        // Predicated region
        $region17: #{tpu_custom_call.1} parent=15 // pred_check
          %p84 = pneg %p33
        $region18: #{tpu_custom_call.1} parent=15 // pred_check_branch
          %86 = sbr.rel (%p84) target = $region20
        $region19: #{tpu_custom_call.1} parent=15 // pred_region
          %s87 = sand.u32 %s23, 1
          %s88 = scalar_lea.sflag [#allocation3], %s87
          %s89 = sand.u32 %s23, 1
          %s90 = smul.addr %s89, 8
          %s91 = scalar_lea.vmem [#allocation2], %s90
          %93 = vsyncadd %s88, 0
          %s94 = smul.addr %s13, 2
          %s95 = smul.addr %s94, 4
          %s96 = scalar_lea.hbm %s0, %s95
          %s98 = sshll.u32 %s96, 4
          %s99 = int_to_ptr.hbm [resolvable:$true] %s98
          %s100 = sshll.u32 %s91, 4
          %s101 = int_to_ptr.vmem [resolvable:$true] %s100
          %103 = dma.hbm_to_vmem [thread:$0]  %s99, 128, %s101, %s88
        $region20: #{tpu_custom_call.1} parent=15 // pred_fallthru
          _
      $region16: #{tpu_custom_call.1} parent=5 // pred_fallthru
        _
      %p104 = scmp.le.s32.totalorder 1, %s13
      %p105 = scmp.lt.s32.totalorder %s13, 3
      %p106 = pnand %p104, %p105
      %p107 = pneg %p106
      // Predicated region
      $region21: #{tpu_custom_call.1} parent=5 // pred_check
        _
      $region22: #{tpu_custom_call.1} parent=5 // pred_check_branch
        %109 = sbr.rel (%p106) target = $region24
      $region23: #{tpu_custom_call.1} parent=5 // pred_region
        %s110 = ssub.s32 %s13, 1
        %s111 = sand.u32 %s26, 1
        %s112 = scalar_lea.sflag [#allocation3], %s111
        %s113 = sand.u32 %s26, 1
        %s114 = smul.addr %s113, 8
        %s115 = scalar_lea.vmem [#allocation2], %s114
        // Predicated region
        $region25: #{tpu_custom_call.1} parent=23 // pred_check
          %p116 = pneg %p39
        $region26: #{tpu_custom_call.1} parent=23 // pred_check_branch
          %118 = sbr.rel (%p116) target = $region28
        $region27: #{tpu_custom_call.1} parent=23 // pred_region
          %120 = dma.done %s112, 128
        $region28: #{tpu_custom_call.1} parent=23 // pred_fallthru
          _
        %s121 = sand.u32 %s26, 1
        %s122 = scalar_lea.sflag [#allocation3], %s121
        %s123 = sand.u32 %s26, 1
        %s124 = smul.addr %s123, 8
        %s125 = scalar_lea.vmem [#allocation2], %s124
        %p126 = pneg %p39
        %p127 = pneg %p36
        %p128 = pneg %p65
        %p129 = pneg %p62
        %s130 = sand.u32 %s52, 1
        %s131 = scalar_lea.sflag [#allocation4], %s130
        %s132 = sand.u32 %s52, 1
        %s133 = smul.addr %s132, 8
        %s134 = scalar_lea.vmem [#allocation5], %s133
        %v135 = vld [vmem:[%s115] sm:$0xff]
        %v136 = vmul.f32 %v135, %v135
        %138 = vst [vmem:[#allocation1] ss:$2 sm:$0xff] %v136
        %v139 = vld.sshfl [vmem:[#allocation1] sm:$0xff pattern:$0x75316420]
        %v140 = vld.sshfl [vmem:[#allocation1 + $0x8] sm:$0xff pattern:$0x75316420]
        %vm143 = vcmask 1043456
        %v144 = vsel %vm143, %v139, 0.0
        %v145 = vrot.slane %v144, 4
        %v146 = vadd.f32 %v144, %v145
        %v147 = vrot.slane %v146, 2
        %v148 = vadd.f32 %v146, %v147
        %v149 = vrot.slane %v148, 1
        %v150 = vadd.f32 %v148, %v149
        %v151 = vsel %vm143, %v140, 0.0
        %v152 = vrot.slane %v151, 4
        %v153 = vadd.f32 %v151, %v152
        %v154 = vrot.slane %v153, 2
        %v155 = vadd.f32 %v153, %v154
        %v156 = vrot.slane %v155, 1
        %v157 = vadd.f32 %v155, %v156
        %v158 = vmul.f32 %v150, 0.25
        %v159 = vmul.f32 %v157, 0.25
        %v160 = vadd.f32 %v158, 1e-08
        %v161 = vadd.f32 %v159, 1e-08
        %v162 = vrsqrt.pop %v160
        %v163 = vmul.f32 %v162, %v160
        %v164 = vmul.f32 %v163, %v162
        %v165 = vmul.f32 0.5, %v164
        %v166 = vsub.f32 1.5, %v165
        %v167 = vmul.f32 %v162, %v166
        %vm168 = vweird.f32 %v160
        %vm169 = vweird.f32 %v162
        %vm170 = vmor %vm168, %vm169
        %v171 = vsel %vm170, %v162, %v167
        %v172 = vrsqrt.pop %v161
        %v173 = vmul.f32 %v172, %v161
        %v174 = vmul.f32 %v173, %v172
        %v175 = vmul.f32 0.5, %v174
        %v176 = vsub.f32 1.5, %v175
        %v177 = vmul.f32 %v172, %v176
        %vm178 = vweird.f32 %v161
        %vm179 = vweird.f32 %v172
        %vm180 = vmor %vm178, %vm179
        %v181 = vsel %vm180, %v172, %v177
        %v184 = vrot.slane %v181, 4
        %v185 = vsel %vm143, %v171, %v184
        %v187 = vmul.f32 %v135, %v185
        %188 = vst [vmem:[%s134] sm:$0xff] %v187
        %s189 = sand.u32 %s52, 1
        %s190 = scalar_lea.sflag [#allocation4], %s189
        %s191 = sand.u32 %s52, 1
        %s192 = smul.addr %s191, 8
        %s193 = scalar_lea.vmem [#allocation5], %s192
        // Predicated region
        $region29: #{tpu_custom_call.1} parent=23 // pred_check
          %p194 = pneg %p62
        $region30: #{tpu_custom_call.1} parent=23 // pred_check_branch
          %196 = sbr.rel (%p194) target = $region32
        $region31: #{tpu_custom_call.1} parent=23 // pred_region
          %198 = vsyncadd %s190, 0
          %s199 = smul.addr %s18, 2
          %s200 = smul.addr %s199, 4
          %s201 = scalar_lea.hbm %s1, %s200
          %s203 = sshll.u32 %s193, 4
          %s204 = int_to_ptr.vmem [resolvable:$true] %s203
          %s205 = sshll.u32 %s201, 4
          %s206 = int_to_ptr.hbm [resolvable:$true] %s205
          %208 = dma.vmem_to_hbm [thread:$0]  %s204, 128, %s206, %s190
        $region32: #{tpu_custom_call.1} parent=23 // pred_fallthru
          _
      $region24: #{tpu_custom_call.1} parent=5 // pred_fallthru
        _
      %p209 = scmp.le.s32.totalorder 2, %s13
      // Predicated region
      $region33: #{tpu_custom_call.1} parent=5 // pred_check
        %p210 = pneg %p209
      $region34: #{tpu_custom_call.1} parent=5 // pred_check_branch
        %212 = sbr.rel (%p210) target = $region36
      $region35: #{tpu_custom_call.1} parent=5 // pred_region
        %s213 = ssub.s32 %s13, 2
        // Predicated region
        $region37: #{tpu_custom_call.1} parent=35 // pred_check
          %p214 = pneg %p68
        $region38: #{tpu_custom_call.1} parent=35 // pred_check_branch
          %216 = sbr.rel (%p214) target = $region40
        $region39: #{tpu_custom_call.1} parent=35 // pred_region
          %s217 = sand.u32 %s53, 1
          %s218 = scalar_lea.sflag [#allocation4], %s217
          %s219 = sand.u32 %s53, 1
          %s220 = smul.addr %s219, 8
          %s221 = scalar_lea.vmem [#allocation5], %s220
          %223 = dma.done %s218, 128
        $region40: #{tpu_custom_call.1} parent=35 // pred_fallthru
          _
      $region36: #{tpu_custom_call.1} parent=5 // pred_fallthru
        _
    $region6: #{tpu_custom_call.1} parent=1 // loop_footer
      %s17 = sadd.s32 1, %s13
    $region7: #{tpu_custom_call.1} parent=1 // loop_footer_branch
      %12 = sbr.rel target = $region3
    $region8: #{tpu_custom_call.1} parent=1 // loop_exit
      _
    %224 = vsyncpa [#allocation3], 1
    %s225 = scalar_lea.sflag [#allocation3], 1
    %226 = vsyncpa %s225, 1
    %227 = vsyncpa [#allocation4], 1
    %s228 = scalar_lea.sflag [#allocation4], 1
    %229 = vsyncpa %s228, 1

</llo_original>
